<compile_context>
chip_gen: v7x
topology: tpu7x:2x2x1
jax: 0.10.0
libtpu: 0.0.40
codegen_flags: <defaults>
</compile_context>

<pallas_src>
import math

import jax
import jax.numpy as jnp
from jax.experimental import pallas as pl
from jax.experimental.pallas import tpu as pltpu


def _round_up(x: int, m: int) -> int:
    return (x + m - 1) // m * m


# ---------------------------------------------------------------------------
# Kernel: grid (M tiles, N tiles, K tiles), K innermost & "arbitrary".
#   x_ref  : (tile_m, tile_k)  caller dtype (cast to bf16 for the MXU in-kernel)
#   w_ref  : (tile_k, tile_n)  bf16, sqrt(input_size) pre-folded
#   b_ref  : (1, tile_n)       f32,  sqrt(input_size) pre-folded
#   o_ref  : (tile_m, tile_n)  caller dtype
#   acc_ref: (tile_m, tile_n)  f32 VMEM scratch, resident across the K axis
# ---------------------------------------------------------------------------
def _linear_kernel(x_ref, w_ref, b_ref, o_ref, acc_ref):
    kk = pl.program_id(2)

    @pl.when(kk == 0)
    def _init():
        acc_ref[...] = jnp.zeros_like(acc_ref)

    # bf16 operands -> MXU native rate; f32 accumulate.
    acc_ref[...] += jnp.dot(
        x_ref[...].astype(w_ref.dtype),
        w_ref[...],
        preferred_element_type=jnp.float32,
    )

    @pl.when(kk == pl.num_programs(2) - 1)
    def _finalize():
        # Scale already folded into w/b: epilogue is bias-add + cast only.
        o_ref[...] = (acc_ref[...] + b_ref[...]).astype(o_ref.dtype)


class PallasLinearEmbed:
    """Pallas equivalent of the PyTorch `Linear` module (nn.Linear + sqrt scale)."""

    # Keep weights as a single resident K block while vocab <= this; larger
    # vocabs get K-tiled so the weight never has to fit VMEM whole.
    _K_RESIDENT_MAX = 2048
    # Tile-derivation budget; conservative so it also fits v7x (64 MiB VMEM).
    _VMEM_BUDGET = 24 * 1024 * 1024

    def __init__(self, input_size: int, vocab: int, key):
        self.input_size = int(input_size)
        self.vocab = int(vocab)
        self.scale = math.sqrt(float(input_size))

        # Deterministic PyTorch-Linear-like init: W (input_size, vocab), b (input_size,)
        kw, kb = jax.random.split(key)
        bound = 1.0 / math.sqrt(vocab)
        self.w = jax.random.uniform(kw, (input_size, vocab), jnp.float32, -bound, bound)
        self.b = jax.random.uniform(kb, (input_size,), jnp.float32, -bound, bound)

        # ------------------ one-time packing (hoisted out of forward) -------
        self.np_ = _round_up(self.input_size, 128)  # lane-dense N
        if self.vocab <= self._K_RESIDENT_MAX:
            self.kp = self.vocab                    # no K padding, no K tiling
            self.tile_k = self.vocab
        else:
            self.kp = _round_up(self.vocab, 128)
            self.tile_k = (512 if self.kp % 512 == 0
                           else 256 if self.kp % 256 == 0 else 128)
        if self.np_ <= 512:
            self.tile_n = self.np_
        else:
            self.tile_n = (512 if self.np_ % 512 == 0
                           else 256 if self.np_ % 256 == 0 else 128)

        # bf16 weights (MXU-native), sqrt(input_size) folded in, zero-padded.
        self.w_packed = (
            jnp.zeros((self.kp, self.np_), jnp.bfloat16)
            .at[: self.vocab, : self.input_size]
            .set((self.w.T * self.scale).astype(jnp.bfloat16))
        )
        # f32 bias with scale folded in, kept as a lane-dense (1, Np) operand.
        self.b_packed = (
            jnp.zeros((1, self.np_), jnp.float32)
            .at[0, : self.input_size]
            .set(self.b * self.scale)
        )

    # Largest tile_m (multiple of 8) whose double-buffered working set fits the budget.
    def _pick_tile_m(self, m: int, x_itemsize: int, out_itemsize: int) -> int:
        n_tiles = self.np_ // self.tile_n
        tile_m = 8
        for tm in (1024, 512, 256, 128, 64, 32, 16, 8):
            need = (
                2 * tm * self.tile_k * x_itemsize          # x double buffer
                + 2 * self.tile_k * self.tile_n * 2        # w double buffer (bf16)
                + 2 * self.tile_n * 4                      # bias
                + 2 * tm * self.tile_n * out_itemsize      # out double buffer
                + tm * self.tile_n * 4                     # f32 accumulator scratch
            )
            if need <= self._VMEM_BUDGET:
                tile_m = tm
                break
        # Don't make the tile larger than the (8-aligned) problem.
        tile_m = min(tile_m, _round_up(max(m, 8), 8))
        # v7x has 2 TensorCores: for small M make sure the parallel grid has
        # at least 2 steps so both cores get work (no effect on v5e/v6e).
        if n_tiles == 1 and m > 8 and pl.cdiv(m, tile_m) == 1:
            tile_m = _round_up(pl.cdiv(m, 2), 8)
        return tile_m

    def __call__(self, x):
        *lead, k = x.shape
        assert k == self.vocab, (k, self.vocab)
        m = 1
        for d in lead:
            m *= d

        out_dtype = x.dtype                 # emit in caller's dtype (bf16 stays bf16)
        x2 = x.reshape(m, k)                # no dtype cast, no M padding / copy
        if self.kp != k:                    # pad K only (large-vocab, K-tiled path)
            x2 = jnp.pad(x2, ((0, 0), (0, self.kp - k)))

        x_itemsize = jnp.dtype(x2.dtype).itemsize
        out_itemsize = jnp.dtype(out_dtype).itemsize
        tile_m = self._pick_tile_m(m, x_itemsize, out_itemsize)
        tile_k, tile_n = self.tile_k, self.tile_n

        m_tiles = pl.cdiv(m, tile_m)        # ragged last M block handled by Pallas
        n_tiles = self.np_ // tile_n
        k_tiles = self.kp // tile_k

        # Explicit scoped-VMEM limit covering the double-buffered working set.
        need = (
            2 * tile_m * tile_k * x_itemsize
            + 2 * tile_k * tile_n * 2
            + 2 * tile_n * 4
            + 2 * tile_m * tile_n * out_itemsize
            + tile_m * tile_n * 4
        )
        vmem_limit = int(min(max(need + (8 << 20), 32 << 20), 56 << 20))

        out_padded = pl.pallas_call(
            _linear_kernel,
            out_shape=jax.ShapeDtypeStruct((m, self.np_), out_dtype),
            grid_spec=pltpu.PrefetchScalarGridSpec(
                num_scalar_prefetch=0,
                grid=(m_tiles, n_tiles, k_tiles),
                in_specs=[
                    pl.BlockSpec((tile_m, tile_k), lambda i, j, kk: (i, kk)),
                    # NOTE: when k_tiles == n_tiles == 1 the weight block is
                    # grid-invariant; a single-buffered pipeline_mode would save
                    # one weight copy in VMEM but is left at the default for
                    # compile robustness (weight slabs here are small).
                    pl.BlockSpec((tile_k, tile_n), lambda i, j, kk: (kk, j)),
                    pl.BlockSpec((1, tile_n), lambda i, j, kk: (0, j)),
                ],
                out_specs=pl.BlockSpec((tile_m, tile_n), lambda i, j, kk: (i, j)),
                scratch_shapes=[pltpu.VMEM((tile_m, tile_n), jnp.float32)],
            ),
            compiler_params=pltpu.CompilerParams(
                dimension_semantics=("parallel", "parallel", "arbitrary"),
                vmem_limit_bytes=vmem_limit,
            ),
            cost_estimate=pl.CostEstimate(
                flops=2 * m * self.vocab * self.input_size,
                transcendentals=0,
                bytes_accessed=(
                    m * self.vocab * x_itemsize
                    + self.vocab * self.input_size * 2
                    + self.input_size * 4
                    + m * self.input_size * out_itemsize
                ),
            ),
        )(x2, self.w_packed, self.b_packed)

        out = out_padded[:, : self.input_size]
        return out.reshape(*lead, self.input_size)


if __name__ == "__main__":
    key = jax.random.PRNGKey(0)
    key, kx, kparam = jax.random.split(key, 3)

    # Small shapes consistent with the module's forward:
    #   vocab (input feature dim) = 12, input_size (embed dim) = 32,
    #   x: (batch=4, seq=8, vocab=12)
    input_size, vocab = 32, 12
    batch, seq = 4, 8

    x = jax.random.normal(kx, (batch, seq, vocab), jnp.float32)
    mod = PallasLinearEmbed(input_size, vocab, kparam)

    out = jax.block_until_ready(mod(x))
    assert out.shape == (batch, seq, input_size), out.shape

    # Reference matching the kernel arithmetic (bf16 operands, f32 accumulate).
    scale = math.sqrt(float(input_size))
    w_bf = (mod.w.T * scale).astype(jnp.bfloat16).astype(jnp.float32)
    x_bf = x.astype(jnp.bfloat16).astype(jnp.float32)
    ref = (x_bf.reshape(-1, vocab) @ w_bf + mod.b * scale).reshape(batch, seq, input_size)
    assert jnp.allclose(out, ref, atol=1e-3, rtol=1e-3), float(jnp.max(jnp.abs(out - ref)))

    # Loose sanity check against the exact f32 module semantics.
    ref_f32 = (x @ mod.w.T + mod.b) * scale
    assert jnp.allclose(out, ref_f32, atol=0.5, rtol=0.05)

    print("KERNEL_OK")
</pallas_src>

<mosaic_0001>
module attributes {stable_mosaic.version = 11 : i64} {
  func.func @_linear_kernel(%arg0: i32, %arg1: i32, %arg2: i32, %arg3: memref<16x12xf32, #tpu.memory_space<vmem>>, %arg4: memref<12x128xbf16, #tpu.memory_space<vmem>>, %arg5: memref<1x128xf32, #tpu.memory_space<vmem>>, %arg6: memref<16x128xf32, #tpu.memory_space<vmem>>, %arg7: memref<16x128xf32, #tpu.memory_space<vmem>>) attributes {dimension_semantics = [#tpu.dimension_semantics<parallel>, #tpu.dimension_semantics<parallel>, #tpu.dimension_semantics<arbitrary>], iteration_bounds = array<i64: 2, 1, 1>, scalar_prefetch = 0 : i64, scratch_operands = 1 : i64, tpu.core_type = #tpu.core_type<tc>, window_params = [{transform_indices = @transform_0, window_bounds = array<i64: 16, 12>}, {transform_indices = @transform_1, window_bounds = array<i64: 12, 128>}, {transform_indices = @transform_2, window_bounds = array<i64: 1, 128>}, {transform_indices = @transform_3, window_bounds = array<i64: 16, 128>}]} {
    %c0_i32 = arith.constant 0 : i32
    %0 = arith.cmpi eq, %arg2, %c0_i32 : i32
    %1 = arith.extui %0 : i1 to i32
    %c0_i32_0 = arith.constant 0 : i32
    %2 = arith.cmpi ne, %1, %c0_i32_0 : i32
    scf.if %2 {
      %cst_10 = arith.constant 0.000000e+00 : f32
      %13 = vector.broadcast %cst_10 : f32 to vector<16x128xf32>
      %c0_11 = arith.constant 0 : index
      %c0_12 = arith.constant 0 : index
      %14 = vector.load %arg7[%c0_11, %c0_12] : memref<16x128xf32, #tpu.memory_space<vmem>>, vector<16x128xf32>
      tpu.vector_store %arg7[%c0_11, %c0_12], %13 {strides = array<i32>} : memref<16x128xf32, #tpu.memory_space<vmem>>, vector<16x128xf32>,
    } else {
    }
    %c0 = arith.constant 0 : index
    %c0_1 = arith.constant 0 : index
    %3 = vector.load %arg7[%c0, %c0_1] : memref<16x128xf32, #tpu.memory_space<vmem>>, vector<16x128xf32>
    %c0_2 = arith.constant 0 : index
    %c0_3 = arith.constant 0 : index
    %4 = vector.load %arg3[%c0_2, %c0_3] : memref<16x12xf32, #tpu.memory_space<vmem>>, vector<16x12xf32>
    %5 = arith.truncf %4 : vector<16x12xf32> to vector<16x12xbf16>
    %c0_4 = arith.constant 0 : index
    %c0_5 = arith.constant 0 : index
    %6 = vector.load %arg4[%c0_4, %c0_5] : memref<12x128xbf16, #tpu.memory_space<vmem>>, vector<12x128xbf16>
    %cst = arith.constant dense<0.000000e+00> : vector<16x128xf32>
    %7 = tpu.matmul %5, %6, %cst {dimension_numbers = #tpu.dot_dimension_numbers<[1], [0], [0], [1], [0, 0, 1, 1], [], []>} : vector<16x12xbf16>, vector<12x128xbf16>, vector<16x128xf32> -> vector<16x128xf32>
    %8 = arith.addf %3, %7 : vector<16x128xf32>
    %c0_6 = arith.constant 0 : index
    %c0_7 = arith.constant 0 : index
    %9 = vector.load %arg7[%c0_6, %c0_7] : memref<16x128xf32, #tpu.memory_space<vmem>>, vector<16x128xf32>
    tpu.vector_store %arg7[%c0_6, %c0_7], %8 {strides = array<i32>} : memref<16x128xf32, #tpu.memory_space<vmem>>, vector<16x128xf32>,
    %c0_i32_8 = arith.constant 0 : i32
    %10 = arith.cmpi eq, %arg2, %c0_i32_8 : i32
    %11 = arith.extui %10 : i1 to i32
    %c0_i32_9 = arith.constant 0 : i32
    %12 = arith.cmpi ne, %11, %c0_i32_9 : i32
    scf.if %12 {
      %c0_10 = arith.constant 0 : index
      %c0_11 = arith.constant 0 : index
      %13 = vector.load %arg7[%c0_10, %c0_11] : memref<16x128xf32, #tpu.memory_space<vmem>>, vector<16x128xf32>
      %c0_12 = arith.constant 0 : index
      %c0_13 = arith.constant 0 : index
      %14 = vector.load %arg5[%c0_12, %c0_13] : memref<1x128xf32, #tpu.memory_space<vmem>>, vector<1x128xf32>
      %15 = vector.broadcast %14 : vector<1x128xf32> to vector<16x128xf32>
      %16 = arith.addf %13, %15 : vector<16x128xf32>
      %c0_14 = arith.constant 0 : index
      %c0_15 = arith.constant 0 : index
      %17 = vector.load %arg6[%c0_14, %c0_15] : memref<16x128xf32, #tpu.memory_space<vmem>>, vector<16x128xf32>
      tpu.vector_store %arg6[%c0_14, %c0_15], %16 {strides = array<i32>} : memref<16x128xf32, #tpu.memory_space<vmem>>, vector<16x128xf32>,
    } else {
    }
    return
  }
  func.func @transform_0(%arg0: i32, %arg1: i32, %arg2: i32) -> (i32, i32) {
    %c0_i32 = arith.constant 0 : i32
    return %arg0, %arg2 : i32, i32
  }
  func.func @transform_1(%arg0: i32, %arg1: i32, %arg2: i32) -> (i32, i32) {
    %c0_i32 = arith.constant 0 : i32
    return %arg2, %arg1 : i32, i32
  }
  func.func @transform_2(%arg0: i32, %arg1: i32, %arg2: i32) -> (i32, i32) {
    %c0_i32 = arith.constant 0 : i32
    %c0_i32_0 = arith.constant 0 : i32
    return %c0_i32, %arg1 : i32, i32
  }
  func.func @transform_3(%arg0: i32, %arg1: i32, %arg2: i32) -> (i32, i32) {
    %c0_i32 = arith.constant 0 : i32
    return %arg0, %arg1 : i32, i32
  }
}

</mosaic_0001>

<llo_original>
// kernel: tpu_custom_call.1
$region0: #{tpu_custom_call.1}
  #allocation0 [shape = 'u32[]', space=smem, size = 0x4, offset = 0x4, fixed_abs, tag = 'smem constant byte address 0x4 - core index']
  #allocation1 [shape = 'u32[144,128]{1,0:T(1,128)}', space=vmem, size = 0x12000, scoped, tag = 'internal scratch']
  #allocation2 [shape = 'f32[16,128]{1,0:T(8,128)}', space=vmem, size = 0x2000, scoped, tag = 'scratch operand']
  %s0 = inlined_call_operand.vmem [shape: f32[32,12], index: 0, kind: input, shape index: {}]
  %s1 = inlined_call_operand.vmem [shape: bf16[12,128], index: 1, kind: input, shape index: {}]
  %s2 = inlined_call_operand.vmem [shape: f32[1,128], index: 2, kind: input, shape index: {}]
  %s3 = inlined_call_operand.hbm [shape: f32[32,128], index: 3, kind: output, shape index: {}]
  %s4 = sld [smem:[#allocation0]]
  $region53: #{tpu_custom_call.1} parent=0
    _
  %s6 = ssub.s32 1, %s4
  %s7 = scalar_select 0, %s6, %s4
  $region1: #{tpu_custom_call.1} parent=0
    #allocation3 [shape = 'u8[16384]{0}', space=vmem, size = 0x4000, scoped, tag = 'output window, operand 0']
    #allocation4 [shape = 's32[2]{0}', space=sflag, size = 0x8, scoped, tag = 'scoped memory for tpu_custom_call.1']
    %8 = vsyncpa [#allocation4], 0
    %s9 = scalar_lea.sflag [#allocation4], 1
    %10 = vsyncpa %s9, 0
    loop: start=0, step=1, limit=4
    $region2: #{tpu_custom_call.1} parent=1 // loop_pre_header
      _
    $region3: #{tpu_custom_call.1} parent=1 // loop_header
      %s12 = sphi 0, %s16
      %p13 = scmp.ge.s32.totalorder %s12, 4
      %s19 = sphi 0, %s38
      %s20 = sphi 0, %s34
      %s21 = sphi 0, %s30
      %s22 = sphi 0, %s19
      %s23 = sphi 0, %s20
      %s24 = sphi 0, %s21
      %s25 = sphi 0, %s22
      %s26 = sphi 0, %s23
      %s27 = sphi 0, %s24
      %s43 = sphi 0, %s45
      %s46 = sphi 0, %s43
      %s47 = sphi 0, %s46
      %s63 = sphi 0, %s47
      %s71 = sphi 0, %s73
      %s74 = sphi 0, %s71
      %s75 = sphi 0, %s74
      %s91 = sphi 0, %s75
      %s97 = sphi 0, %s99
      %s100 = sphi 0, %s97
      %s101 = sphi 0, %s100
      %s117 = sphi 0, %s101
      %s125 = sphi 0, %s127
      %s128 = sphi 0, %s125
      %s129 = sphi 0, %s128
      %s145 = sphi 0, %s129
    $region4: #{tpu_custom_call.1} parent=1 // loop_header_branch
      %15 = sbr.rel (%p13) target = $region8
    $region5: #{tpu_custom_call.1} parent=1 // loop_body
      %s17 = ssub.s32 %s12, 1
      %s18 = ssub.s32 %s12, 2
      %s28 = sadd.s32 1, %s21
      %p29 = scmp.ge.s32.totalorder %s28, 1
      %s30 = scalar_select %p29, 0, %s28
      %s31 = sadd.s32 1, %s20
      %s32 = scalar_select %p29, %s31, %s20
      %p33 = scmp.ge.s32.totalorder %s32, 1
      %s34 = scalar_select %p33, 0, %s32
      %s35 = sadd.s32 1, %s19
      %s36 = scalar_select %p33, %s35, %s19
      %p37 = scmp.ge.s32.totalorder %s36, 2
      %s38 = scalar_select %p37, 0, %s36
      %s39 = ssub.s32 %s19, %s38
      %s40 = ssub.s32 %s21, %s30
      %s41 = sor.u32 %s39, %s40
      %p42 = scmp.eq.s32.totalorder %s41, 0
      %s44 = sadd.s32 %s43, 1
      %s45 = scalar_select %p42, %s43, %s44
      %p48 = pneg %p42
      %p49 = scmp.eq.s32.totalorder %s12, 1
      %p50 = por %p48, %p49
      %p51 = scmp.ne.s32.totalorder %s43, %s46
      %p52 = scmp.eq.s32.totalorder %s12, 0
      %p53 = por %p51, %p52
      %p54 = scmp.ne.s32.totalorder %s43, %s46
      %p55 = scmp.eq.s32.totalorder %s17, 1
      %p56 = por %p54, %p55
      %p57 = scmp.ne.s32.totalorder %s46, %s47
      %p58 = scmp.eq.s32.totalorder %s17, 0
      %p59 = por %p57, %p58
      %p60 = scmp.ne.s32.totalorder %s46, %s47
      %p61 = scmp.eq.s32.totalorder %s18, 1
      %p62 = por %p60, %p61
      %p64 = scmp.ne.s32.totalorder %s47, %s63
      %p65 = scmp.eq.s32.totalorder %s18, 0
      %p66 = por %p64, %p65
      %s67 = ssub.s32 %s21, %s30
      %s68 = ssub.s32 %s20, %s34
      %s69 = sor.u32 %s67, %s68
      %p70 = scmp.eq.s32.totalorder %s69, 0
      %s72 = sadd.s32 %s71, 1
      %s73 = scalar_select %p70, %s71, %s72
      %p76 = pneg %p70
      %p77 = scmp.eq.s32.totalorder %s12, 1
      %p78 = por %p76, %p77
      %p79 = scmp.ne.s32.totalorder %s71, %s74
      %p80 = scmp.eq.s32.totalorder %s12, 0
      %p81 = por %p79, %p80
      %p82 = scmp.ne.s32.totalorder %s71, %s74
      %p83 = scmp.eq.s32.totalorder %s17, 1
      %p84 = por %p82, %p83
      %p85 = scmp.ne.s32.totalorder %s74, %s75
      %p86 = scmp.eq.s32.totalorder %s17, 0
      %p87 = por %p85, %p86
      %p88 = scmp.ne.s32.totalorder %s74, %s75
      %p89 = scmp.eq.s32.totalorder %s18, 1
      %p90 = por %p88, %p89
      %p92 = scmp.ne.s32.totalorder %s75, %s91
      %p93 = scmp.eq.s32.totalorder %s18, 0
      %p94 = por %p92, %p93
      %s95 = ssub.s32 %s20, %s34
      %p96 = scmp.eq.s32.totalorder %s95, 0
      %s98 = sadd.s32 %s97, 1
      %s99 = scalar_select %p96, %s97, %s98
      %p102 = pneg %p96
      %p103 = scmp.eq.s32.totalorder %s12, 1
      %p104 = por %p102, %p103
      %p105 = scmp.ne.s32.totalorder %s97, %s100
      %p106 = scmp.eq.s32.totalorder %s12, 0
      %p107 = por %p105, %p106
      %p108 = scmp.ne.s32.totalorder %s97, %s100
      %p109 = scmp.eq.s32.totalorder %s17, 1
      %p110 = por %p108, %p109
      %p111 = scmp.ne.s32.totalorder %s100, %s101
      %p112 = scmp.eq.s32.totalorder %s17, 0
      %p113 = por %p111, %p112
      %p114 = scmp.ne.s32.totalorder %s100, %s101
      %p115 = scmp.eq.s32.totalorder %s18, 1
      %p116 = por %p114, %p115
      %p118 = scmp.ne.s32.totalorder %s101, %s117
      %p119 = scmp.eq.s32.totalorder %s18, 0
      %p120 = por %p118, %p119
      %s121 = ssub.s32 %s19, %s38
      %s122 = ssub.s32 %s20, %s34
      %s123 = sor.u32 %s121, %s122
      %p124 = scmp.eq.s32.totalorder %s123, 0
      %s126 = sadd.s32 %s125, 1
      %s127 = scalar_select %p124, %s125, %s126
      %p130 = pneg %p124
      %p131 = scmp.eq.s32.totalorder %s12, 1
      %p132 = por %p130, %p131
      %p133 = scmp.ne.s32.totalorder %s125, %s128
      %p134 = scmp.eq.s32.totalorder %s12, 0
      %p135 = por %p133, %p134
      %p136 = scmp.ne.s32.totalorder %s125, %s128
      %p137 = scmp.eq.s32.totalorder %s17, 1
      %p138 = por %p136, %p137
      %p139 = scmp.ne.s32.totalorder %s128, %s129
      %p140 = scmp.eq.s32.totalorder %s17, 0
      %p141 = por %p139, %p140
      %p142 = scmp.ne.s32.totalorder %s128, %s129
      %p143 = scmp.eq.s32.totalorder %s18, 1
      %p144 = por %p142, %p143
      %p146 = scmp.ne.s32.totalorder %s129, %s145
      %p147 = scmp.eq.s32.totalorder %s18, 0
      %p148 = por %p146, %p147
      %p149 = scmp.le.s32.totalorder 1, %s12
      %p150 = scmp.lt.s32.totalorder %s12, 3
      %p151 = pnand %p149, %p150
      %p152 = pneg %p151
      // Predicated region
      $region9: #{tpu_custom_call.1} parent=5 // pred_check
        _
      $region10: #{tpu_custom_call.1} parent=5 // pred_check_branch
        %154 = sbr.rel (%p151) target = $region12
      $region11: #{tpu_custom_call.1} parent=5 // pred_region
        %s155 = ssub.s32 %s12, 1
        // Predicated region
        $region13: #{tpu_custom_call.1} parent=11 // pred_check
          %p156 = pneg %p87
        $region14: #{tpu_custom_call.1} parent=11 // pred_check_branch
          %158 = sbr.rel (%p156) target = $region16
        $region15: #{tpu_custom_call.1} parent=11 // pred_region
          %s159 = smul.u32 2, %s24
          %p160 = scmp.lt.s32.totalorder %s159, 1
          %s161 = scalar_select %p160, %s159, 1
          %p162 = scmp.lt.s32.totalorder %s23, 0
          %s163 = scalar_select %p162, %s23, 0
          %s164 = sadd.s32 %s163, %s161
          %s165 = smul.addr %s164, 4
          %s166 = scalar_lea.vmem %s1, %s165
          %s167 = smul.u32 2, %s24
        $region16: #{tpu_custom_call.1} parent=11 // pred_fallthru
          _
        // Predicated region
        $region17: #{tpu_custom_call.1} parent=11 // pred_check
          %p168 = pneg %p113
        $region18: #{tpu_custom_call.1} parent=11 // pred_check_branch
          %170 = sbr.rel (%p168) target = $region20
        $region19: #{tpu_custom_call.1} parent=11 // pred_region
          %p171 = scmp.lt.s32.totalorder %s23, 0
          %s172 = scalar_select %p171, %s23, 0
          %s173 = scalar_lea.vmem %s2, %s172
        $region20: #{tpu_custom_call.1} parent=11 // pred_fallthru
          _
      $region12: #{tpu_custom_call.1} parent=5 // pred_fallthru
        _
      %p174 = scmp.lt.s32.totalorder %s12, 2
      // Predicated region
      $region21: #{tpu_custom_call.1} parent=5 // pred_check
        %p175 = pneg %p174
      $region22: #{tpu_custom_call.1} parent=5 // pred_check_branch
        %177 = sbr.rel (%p175) target = $region24
      $region23: #{tpu_custom_call.1} parent=5 // pred_region
        // Predicated region
        $region25: #{tpu_custom_call.1} parent=23 // pred_check
          %p178 = pneg %p53
        $region26: #{tpu_custom_call.1} parent=23 // pred_check_branch
          %180 = sbr.rel (%p178) target = $region28
        $region27: #{tpu_custom_call.1} parent=23 // pred_region
          %s181 = smul.u32 2, %s19
          %p182 = scmp.lt.s32.totalorder %s181, 3
          %s183 = scalar_select %p182, %s181, 3
          %p184 = scmp.lt.s32.totalorder %s21, 0
          %s185 = scalar_select %p184, %s21, 0
          %s186 = sadd.s32 %s185, %s183
          %s187 = smul.addr %s186, 8
          %s188 = scalar_lea.vmem %s0, %s187
          %s189 = smul.u32 2, %s19
        $region28: #{tpu_custom_call.1} parent=23 // pred_fallthru
          _
      $region24: #{tpu_custom_call.1} parent=5 // pred_fallthru
        _
      %p190 = scmp.le.s32.totalorder 1, %s12
      %p191 = scmp.lt.s32.totalorder %s12, 3
      %p192 = pnand %p190, %p191
      %p193 = pneg %p192
      // Predicated region
      $region29: #{tpu_custom_call.1} parent=5 // pred_check
        _
      $region30: #{tpu_custom_call.1} parent=5 // pred_check_branch
        %195 = sbr.rel (%p192) target = $region32
      $region31: #{tpu_custom_call.1} parent=5 // pred_region
        %s196 = ssub.s32 %s12, 1
        %s197 = smul.u32 2, %s22
        %p198 = scmp.lt.s32.totalorder %s197, 3
        %s199 = scalar_select %p198, %s197, 3
        %p200 = scmp.lt.s32.totalorder %s24, 0
        %s201 = scalar_select %p200, %s24, 0
        %s202 = sadd.s32 %s201, %s199
        %s203 = smul.addr %s202, 8
        %s204 = scalar_lea.vmem %s0, %s203
        %p205 = pneg %p59
        %p206 = pneg %p56
        %s207 = smul.u32 2, %s24
        %p208 = scmp.lt.s32.totalorder %s207, 1
        %s209 = scalar_select %p208, %s207, 1
        %p210 = scmp.lt.s32.totalorder %s23, 0
        %s211 = scalar_select %p210, %s23, 0
        %s212 = sadd.s32 %s211, %s209
        %s213 = smul.addr %s212, 4
        %s214 = scalar_lea.vmem %s1, %s213
        %p215 = pneg %p87
        %p216 = pneg %p84
        %p217 = scmp.lt.s32.totalorder %s23, 0
        %s218 = scalar_select %p217, %s23, 0
        %s219 = scalar_lea.vmem %s2, %s218
        %p220 = pneg %p113
        %p221 = pneg %p110
        %p222 = pneg %p141
        %p223 = pneg %p138
        %s224 = sand.u32 %s128, 1
        %s225 = scalar_lea.sflag [#allocation4], %s224
        %s226 = sand.u32 %s128, 1
        %s227 = smul.addr %s226, 16
        %s228 = scalar_lea.vmem [#allocation3], %s227
        %s229 = smul.u32 2, %s22
        %p230 = scmp.lt.s32.totalorder %s229, 3
        %s231 = scalar_select %p230, %s229, 3
        %p232 = scmp.lt.s32.totalorder %s24, 0
        %s233 = scalar_select %p232, %s24, 0
        %s234 = sadd.s32 %s233, %s231
        %s235 = smul.addr %s234, 8
        %s236 = scalar_lea.vmem %s0, %s235
        %s237 = smul.u32 2, %s22
        %s238 = smul.u32 2, %s24
        %p239 = scmp.lt.s32.totalorder %s238, 1
        %s240 = scalar_select %p239, %s238, 1
        %p241 = scmp.lt.s32.totalorder %s23, 0
        %s242 = scalar_select %p241, %s23, 0
        %s243 = sadd.s32 %s242, %s240
        %s244 = smul.addr %s243, 4
        %s245 = scalar_lea.vmem %s1, %s244
        %s246 = smul.u32 2, %s24
        %p247 = scmp.lt.s32.totalorder %s23, 0
        %s248 = scalar_select %p247, %s23, 0
        %s249 = scalar_lea.vmem %s2, %s248
        %s250 = smul.u32 2, %s22
        %p252 = scmp.eq.s32.totalorder %s24, 0
        // Predicated region
        $region33: #{tpu_custom_call.1} parent=31 // pred_check
          %p253 = pneg %p252
        $region34: #{tpu_custom_call.1} parent=31 // pred_check_branch
          %255 = sbr.rel (%p253) target = $region36
        $region35: #{tpu_custom_call.1} parent=31 // pred_region
          %256 = vst [vmem:[#allocation2] sm:$0xff] 0.0
          %257 = vst [vmem:[#allocation2 + $0x8] sm:$0xff] 0.0
        $region36: #{tpu_custom_call.1} parent=31 // pred_fallthru
          _
        %v258 = vld [vmem:[#allocation2] sm:$0xff]
        %v259 = vld [vmem:[#allocation2 + $0x8] sm:$0xff]
        %v260 = vld [vmem:[%s236] sm:$0xff]
        %v261 = vld [vmem:[%s236 + $0x8] sm:$0xff]
        %v262 = vpack.c.bf16 %v261, %v260
        %v263 = vld [vmem:[%s245] sm:$0xf]
        %v264 = vld [vmem:[%s245 + $0x4] sm:$0x3]
        %v267 = vunpack.c.l.b16 %v263
        %v268 = vunpack.c.l.b16 %v264
        %v269 = vpack.c.b16 %v268, %v267
        %vm270 = vcmask 97280
        %v272 = vsel %vm270, %v262, 0
        %vm274 = vcmask 1045504
        %v276 = vsel %vm274, %v269, 0
        %278 = vmatprep.subr.bf16.mxu0 0
        %279 = vmatpush1.bf16.msra.mxu0 %v276
        %280 = vmatprep.subr.bf16.mxu0 0
        %281 = vmatpush1.bf16.msra.mxu0 0
        %282 = vmatprep.subr.bf16.mxu0 0
        %283 = vmatpush1.bf16.msra.mxu0 0
        %284 = vmatprep.subr.bf16.mxu0 0
        %285 = vmatpush1.bf16.msra.mxu0 0
        %286 = vmatprep.subr.bf16.mxu0 0
        %287 = vmatpush1.bf16.msra.mxu0 0
        %288 = vmatprep.subr.bf16.mxu0 0
        %289 = vmatpush1.bf16.msra.mxu0 0
        %290 = vmatprep.subr.bf16.mxu0 0
        %291 = vmatpush1.bf16.msra.mxu0 0
        %292 = vmatprep.subr.bf16.mxu0 0
        %293 = vmatpush1.bf16.msra.mxu0 0
        %294 = vmatprep.subr.bf16.mxu0 0
        %295 = vmatpush1.bf16.msra.mxu0 0
        %296 = vmatprep.subr.bf16.mxu0 0
        %297 = vmatpush1.bf16.msra.mxu0 0
        %298 = vmatprep.subr.bf16.mxu0 0
        %299 = vmatpush1.bf16.msra.mxu0 0
        %300 = vmatprep.subr.bf16.mxu0 0
        %301 = vmatpush1.bf16.msra.mxu0 0
        %302 = vmatprep.subr.bf16.mxu0 0
        %303 = vmatpush1.bf16.msra.mxu0 0
        %304 = vmatprep.subr.bf16.mxu0 0
        %305 = vmatpush1.bf16.msra.mxu0 0
        %306 = vmatprep.subr.bf16.mxu0 0
        %307 = vmatpush1.bf16.msra.mxu0 0
        %308 = vmatprep.subr.bf16.mxu0 0
        %309 = vmatpush1.bf16.msra.mxu0 0
        %310 = vmatprep.mubr.bf16.mxu0 0
        %311 = vmatmul.mubr.bf16.gmra.mrb[0].mxu0 %v272
        %v312 = vpop.f32.mrb[0].mxu0
        %v313 = vadd.f32 0.0, %v312
        %v314 = vpop.f32.mrb[0].mxu0
        %v315 = vpop.f32.mrb[0].mxu0
        %v316 = vadd.f32 0.0, %v315
        %v317 = vpop.f32.mrb[0].mxu0
        %318 = vdwg.mxu0
        %v319 = vadd.f32 %v258, %v313
        %v320 = vadd.f32 %v259, %v316
        %321 = vst [vmem:[#allocation2] sm:$0xff] %v319
        %322 = vst [vmem:[#allocation2 + $0x8] sm:$0xff] %v320
        // Predicated region
        $region37: #{tpu_custom_call.1} parent=31 // pred_check
          %p323 = pneg %p252
        $region38: #{tpu_custom_call.1} parent=31 // pred_check_branch
          %325 = sbr.rel (%p323) target = $region40
        $region39: #{tpu_custom_call.1} parent=31 // pred_region
          %v326 = vld [vmem:[#allocation2] sm:$0xff]
          %v327 = vld [vmem:[#allocation2 + $0x8] sm:$0xff]
          %v328 = vld [vmem:[%s249] sm:$0x1]
          %v330 = vlaneseq
          %v331 = vshrl.u32 %v330, 7
          %v332 = vsub.s32 0, %v331
          %v333 = vrot.slane %v328, %v332
          %v335 = vadd.f32 %v326, %v333
          %v336 = vadd.f32 %v327, %v333
          %337 = vst [vmem:[%s228] sm:$0xff] %v335
          %338 = vst [vmem:[%s228 + $0x8] sm:$0xff] %v336
        $region40: #{tpu_custom_call.1} parent=31 // pred_fallthru
          _
        %s339 = sand.u32 %s128, 1
        %s340 = scalar_lea.sflag [#allocation4], %s339
        %s341 = sand.u32 %s128, 1
        %s342 = smul.addr %s341, 16
        %s343 = scalar_lea.vmem [#allocation3], %s342
        // Predicated region
        $region41: #{tpu_custom_call.1} parent=31 // pred_check
          %p344 = pneg %p138
        $region42: #{tpu_custom_call.1} parent=31 // pred_check_branch
          %346 = sbr.rel (%p344) target = $region44
        $region43: #{tpu_custom_call.1} parent=31 // pred_region
          %s347 = smul.u32 2, %s22
          %s349 = ssub.s32 256, 256
          %350 = vsyncadd %s340, %s349
          %s351 = sadd.s32 %s23, %s347
          %s352 = smul.addr %s351, 128
          %s353 = scalar_lea.hbm %s3, %s352
          %s354 = sshll.u32 %s343, 4
          %s355 = int_to_ptr.vmem [resolvable:$true] %s354
          %360 = dma.vmem_to_hbm [thread:$0]  %s355, 256, %s353, %s340, 128, 128, 8
        $region44: #{tpu_custom_call.1} parent=31 // pred_fallthru
          _
      $region32: #{tpu_custom_call.1} parent=5 // pred_fallthru
        _
      %p361 = scmp.le.s32.totalorder 2, %s12
      // Predicated region
      $region45: #{tpu_custom_call.1} parent=5 // pred_check
        %p362 = pneg %p361
      $region46: #{tpu_custom_call.1} parent=5 // pred_check_branch
        %364 = sbr.rel (%p362) target = $region48
      $region47: #{tpu_custom_call.1} parent=5 // pred_region
        %s365 = ssub.s32 %s12, 2
        // Predicated region
        $region49: #{tpu_custom_call.1} parent=47 // pred_check
          %p366 = pneg %p144
        $region50: #{tpu_custom_call.1} parent=47 // pred_check_branch
          %368 = sbr.rel (%p366) target = $region52
        $region51: #{tpu_custom_call.1} parent=47 // pred_region
          %s369 = sand.u32 %s129, 1
          %s370 = scalar_lea.sflag [#allocation4], %s369
          %s371 = sand.u32 %s129, 1
          %s372 = smul.addr %s371, 16
          %s373 = scalar_lea.vmem [#allocation3], %s372
          %374 = dma.done %s370, 256
        $region52: #{tpu_custom_call.1} parent=47 // pred_fallthru
          _
      $region48: #{tpu_custom_call.1} parent=5 // pred_fallthru
        _
    $region6: #{tpu_custom_call.1} parent=1 // loop_footer
      %s16 = sadd.s32 1, %s12
    $region7: #{tpu_custom_call.1} parent=1 // loop_footer_branch
      %11 = sbr.rel target = $region3
    $region8: #{tpu_custom_call.1} parent=1 // loop_exit
      _
    %375 = vsyncpa [#allocation4], 1
    %s376 = scalar_lea.sflag [#allocation4], 1
    %377 = vsyncpa %s376, 1

</llo_original>
